<compile_context>
chip_gen: v7x
topology: tpu7x:2x2x1
jax: 0.10.0
libtpu: 0.0.40
codegen_flags: <defaults>
</compile_context>

<pallas_src>
import functools

import jax
import jax.numpy as jnp
from jax import lax
from jax.experimental import pallas as pl
from jax.experimental.pallas import tpu as pltpu


def _round_up(x, m):
    return (x + m - 1) // m * m


def _hybrid_partial_kernel(p_ref, t_ref, out_ref, pt_acc, den_acc, bce_acc,
                           *, true_r, true_l, mask_rows, mask_cols,
                           binary_targets):
    """Grid = (row_blocks, col_blocks); the col (spatial) axis is the reduction.

    p_ref/t_ref : (TR, TL) VMEM tiles (native dtype, upcast in-kernel).
    out_ref     : (1, 2, 128) block; sublane 0 = dice partial, 1 = BCE partial.
    pt_acc      : (TR, 1) f32, running sum_j p*t          per row.
    den_acc     : (TR, 1) f32, running sum_j (p*p + t*t)  per row.
    bce_acc     : (TR, 1) f32, running sum_j bce term     per row.
    """
    l = pl.program_id(1)
    tr, tl = p_ref.shape

    p = p_ref[...].astype(jnp.float32)
    t = t_ref[...].astype(jnp.float32)

    # Ragged-tail masking (compile-time gated).  Out-of-range rows/lanes of the
    # last blocks contain unspecified data; force p = t = 0 there so they
    # contribute exactly 0 to pt, pp+tt and the BCE term (log(0) clamps to
    # -100 and is multiplied by t = 0).
    if mask_rows or mask_cols:
        ok = None
        if mask_rows:
            rows = (lax.broadcasted_iota(jnp.int32, (tr, tl), 0)
                    + pl.program_id(0) * tr)
            ok = rows < true_r
        if mask_cols:
            cols = lax.broadcasted_iota(jnp.int32, (tr, tl), 1) + l * tl
            cm = cols < true_l
            ok = cm if ok is None else ok & cm
        p = jnp.where(ok, p, 0.0)
        t = jnp.where(ok, t, 0.0)

    pt = p * t
    den = p * p + t * t

    # nn.BCELoss: -(t*log(p) + (1-t)*log(1-p)), logs clamped at -100.
    # Rearranged as t*(log1p(-p) - log(p)) - log1p(-p): identical value
    # (sign already folded in), fewer VALU ops, no cancellation near p=1.
    if binary_targets:
        # Single-transcendental fast path; only valid for t in {0, 1}.
        q = jnp.where(t > 0.5, p, 1.0 - p)
        bce = -jnp.maximum(jnp.log(q), -100.0)
    else:
        log_p = jnp.maximum(jnp.log(p), -100.0)
        log_1mp = jnp.maximum(jnp.log1p(-p), -100.0)
        bce = t * (log_1mp - log_p) - log_1mp

    # Per-step lane reduction (XLU slot is idle in this kernel); keeps the
    # persistent accumulators at one lane-column instead of full tiles.
    pt_s = jnp.sum(pt, axis=1, keepdims=True)     # (TR, 1)
    den_s = jnp.sum(den, axis=1, keepdims=True)
    bce_s = jnp.sum(bce, axis=1, keepdims=True)

    @pl.when(l == 0)
    def _init():
        pt_acc[...] = jnp.zeros_like(pt_acc)
        den_acc[...] = jnp.zeros_like(den_acc)
        bce_acc[...] = jnp.zeros_like(bce_acc)

    pt_acc[...] += pt_s
    den_acc[...] += den_s
    bce_acc[...] += bce_s

    @pl.when(l == pl.num_programs(1) - 1)
    def _finalize():
        smooth = 1.0
        dice_rows = 2.0 * pt_acc[...] / (den_acc[...] + smooth)   # (TR, 1)
        dice_part = jnp.sum(dice_rows)          # masked/padded rows give 0
        bce_part = jnp.sum(bce_acc[...])
        sub = lax.broadcasted_iota(jnp.int32, (1, 2, 128), 1)
        out_ref[...] = jnp.where(sub == 0, dice_part, bce_part)


def hybrid_loss(pred, target, *, binary_targets=False):
    """Pallas implementation of HybridLoss.forward (scalar float32 result).

    binary_targets=True enables a single-log BCE fast path (valid only when
    target is strictly {0,1}); default keeps full nn.BCELoss soft-mask
    semantics.
    """
    assert pred.shape == target.shape and pred.ndim == 4
    N, C, H, W = pred.shape
    R, L = N * C, H * W

    # Contiguous (free) re-layout: one row per (n, c) plane, spatial on lanes.
    p2 = pred.reshape(R, L)
    t2 = target.reshape(R, L)

    itemsize = jnp.dtype(pred.dtype).itemsize
    sublane = {4: 8, 2: 16, 1: 32}.get(itemsize, 8)

    # Lane-dense spatial tiles; row tiles are a dtype-packing multiple.
    TL = min(_round_up(L, 128), 2048)
    TR = min(_round_up(R, sublane), 512)
    # Prefer >= 2 row blocks so the 'parallel' axis can span both TensorCores
    # on dual-TC chips (v7x); no effect on single-TC v5e/v6e.
    if R >= 2 * sublane:
        TR = min(TR, _round_up((R + 1) // 2, sublane))

    grid = (pl.cdiv(R, TR), pl.cdiv(L, TL))
    num_rb = grid[0]
    mask_rows = (R % TR) != 0
    mask_cols = (L % TL) != 0

    kernel = functools.partial(
        _hybrid_partial_kernel,
        true_r=R, true_l=L,
        mask_rows=mask_rows, mask_cols=mask_cols,
        binary_targets=binary_targets,
    )

    # TODO(synk): if profiling shows exposed DMA at row-block boundaries
    # (finalize step is longer), add pipeline_mode=pl.Buffered(3) on the
    # two input BlockSpecs.
    partials = pl.pallas_call(
        kernel,
        out_shape=jax.ShapeDtypeStruct((num_rb, 2, 128), jnp.float32),
        grid_spec=pltpu.PrefetchScalarGridSpec(
            num_scalar_prefetch=0,
            grid=grid,
            in_specs=[
                pl.BlockSpec((TR, TL), lambda r, l: (r, l)),
                pl.BlockSpec((TR, TL), lambda r, l: (r, l)),
            ],
            out_specs=pl.BlockSpec((1, 2, 128), lambda r, l: (r, 0, 0)),
            scratch_shapes=[pltpu.VMEM((TR, 1), jnp.float32)] * 3,
        ),
        compiler_params=pltpu.CompilerParams(
            dimension_semantics=("parallel", "arbitrary"),
            vmem_limit_bytes=32 * 1024 * 1024,
        ),
        cost_estimate=pl.CostEstimate(
            flops=10 * R * L,
            transcendentals=(1 if binary_targets else 2) * R * L,
            bytes_accessed=2 * R * L * itemsize,
        ),
    )(p2, t2)

    dice_sum = jnp.sum(partials[:, 0, 0])
    bce_sum = jnp.sum(partials[:, 1, 0])

    mean_dice = dice_sum / jnp.float32(R)                 # == mean_n mean_c dice
    dice_loss = jnp.clip(1.0 - mean_dice, 0.0, 1.0)
    bce_mean = bce_sum / jnp.float32(R * L)
    return dice_loss + bce_mean


def hybrid_loss_ref(pred, target):
    """Pure-JAX reference mirroring the PyTorch module exactly."""
    smooth = 1.0
    pred = pred.astype(jnp.float32)
    target = target.astype(jnp.float32)
    pt = jnp.sum(pred * target, axis=(2, 3))              # (N, C)
    pp = jnp.sum(pred * pred, axis=(2, 3))
    tt = jnp.sum(target * target, axis=(2, 3))
    dice = jnp.sum(2.0 * pt / (pp + tt + smooth), axis=1) / pred.shape[1]  # (N,)
    dice_loss = jnp.clip(jnp.mean(1.0 - dice), 0.0, 1.0)
    log_p = jnp.maximum(jnp.log(pred), -100.0)
    log_1mp = jnp.maximum(jnp.log(1.0 - pred), -100.0)
    bce = jnp.mean(-(target * log_p + (1.0 - target) * log_1mp))
    return dice_loss + bce


if __name__ == "__main__":
    key = jax.random.PRNGKey(0)
    k1, k2 = jax.random.split(key)

    N, C, H, W = 2, 4, 16, 16
    # pred must be in (0, 1) for BCELoss; target is a binary mask.
    pred = jax.nn.sigmoid(jax.random.normal(k1, (N, C, H, W), jnp.float32))
    target = (jax.random.uniform(k2, (N, C, H, W), jnp.float32) > 0.5).astype(
        jnp.float32)

    loss = jax.block_until_ready(hybrid_loss(pred, target))
    ref = jax.block_until_ready(hybrid_loss_ref(pred, target))

    assert jnp.isfinite(loss), "non-finite loss"
    assert jnp.allclose(loss, ref, rtol=1e-5, atol=1e-5), (loss, ref)
    print("KERNEL_OK")
</pallas_src>

<mosaic_0001>
module attributes {stable_mosaic.version = 11 : i64} {
  func.func @_hybrid_partial_kernel(%arg0: i32, %arg1: i32, %arg2: memref<8x256xf32, #tpu.memory_space<vmem>>, %arg3: memref<8x256xf32, #tpu.memory_space<vmem>>, %arg4: memref<1x2x128xf32, #tpu.memory_space<vmem>>, %arg5: memref<8x1xf32, #tpu.memory_space<vmem>>, %arg6: memref<8x1xf32, #tpu.memory_space<vmem>>, %arg7: memref<8x1xf32, #tpu.memory_space<vmem>>) attributes {dimension_semantics = [#tpu.dimension_semantics<parallel>, #tpu.dimension_semantics<arbitrary>], iteration_bounds = array<i64: 1, 1>, scalar_prefetch = 0 : i64, scratch_operands = 3 : i64, tpu.core_type = #tpu.core_type<tc>, window_params = [{transform_indices = @transform_0, window_bounds = array<i64: 8, 256>}, {transform_indices = @transform_1, window_bounds = array<i64: 8, 256>}, {transform_indices = @transform_2, window_bounds = array<i64: 1, 2, 128>}]} {
    %c0 = arith.constant 0 : index
    %c0_0 = arith.constant 0 : index
    %0 = vector.load %arg2[%c0, %c0_0] : memref<8x256xf32, #tpu.memory_space<vmem>>, vector<8x256xf32>
    %c0_1 = arith.constant 0 : index
    %c0_2 = arith.constant 0 : index
    %1 = vector.load %arg3[%c0_1, %c0_2] : memref<8x256xf32, #tpu.memory_space<vmem>>, vector<8x256xf32>
    %2 = arith.mulf %0, %1 : vector<8x256xf32>
    %3 = arith.mulf %0, %0 : vector<8x256xf32>
    %4 = arith.mulf %1, %1 : vector<8x256xf32>
    %5 = arith.addf %3, %4 : vector<8x256xf32>
    %6 = math.log %0 : vector<8x256xf32>
    %cst = arith.constant -1.000000e+02 : f32
    %7 = vector.broadcast %cst : f32 to vector<8x256xf32>
    %8 = arith.maximumf %6, %7 : vector<8x256xf32>
    %cst_3 = arith.constant 0.000000e+00 : f32
    %9 = vector.broadcast %cst_3 : f32 to vector<8x256xf32>
    %10 = arith.subf %9, %0 : vector<8x256xf32>
    %11 = math.log1p %10 : vector<8x256xf32>
    %cst_4 = arith.constant -1.000000e+02 : f32
    %12 = vector.broadcast %cst_4 : f32 to vector<8x256xf32>
    %13 = arith.maximumf %11, %12 : vector<8x256xf32>
    %14 = arith.subf %13, %8 : vector<8x256xf32>
    %15 = arith.mulf %1, %14 : vector<8x256xf32>
    %16 = arith.subf %15, %13 : vector<8x256xf32>
    %cst_5 = arith.constant dense<0.000000e+00> : vector<8xf32>
    %17 = vector.multi_reduction <add>, %2, %cst_5 [1] : vector<8x256xf32> to vector<8xf32>
    %18 = vector.shape_cast %17 : vector<8xf32> to vector<8x1xf32>
    %cst_6 = arith.constant dense<0.000000e+00> : vector<8xf32>
    %19 = vector.multi_reduction <add>, %5, %cst_6 [1] : vector<8x256xf32> to vector<8xf32>
    %20 = vector.shape_cast %19 : vector<8xf32> to vector<8x1xf32>
    %cst_7 = arith.constant dense<0.000000e+00> : vector<8xf32>
    %21 = vector.multi_reduction <add>, %16, %cst_7 [1] : vector<8x256xf32> to vector<8xf32>
    %22 = vector.shape_cast %21 : vector<8xf32> to vector<8x1xf32>
    %c0_i32 = arith.constant 0 : i32
    %23 = arith.cmpi eq, %arg1, %c0_i32 : i32
    %24 = arith.extui %23 : i1 to i32
    %c0_i32_8 = arith.constant 0 : i32
    %25 = arith.cmpi ne, %24, %c0_i32_8 : i32
    scf.if %25 {
      %cst_23 = arith.constant 0.000000e+00 : f32
      %38 = vector.broadcast %cst_23 : f32 to vector<8x1xf32>
      %c0_24 = arith.constant 0 : index
      %c0_25 = arith.constant 0 : index
      %39 = vector.load %arg5[%c0_24, %c0_25] : memref<8x1xf32, #tpu.memory_space<vmem>>, vector<8x1xf32>
      tpu.vector_store %arg5[%c0_24, %c0_25], %38 {strides = array<i32>} : memref<8x1xf32, #tpu.memory_space<vmem>>, vector<8x1xf32>,
      %cst_26 = arith.constant 0.000000e+00 : f32
      %40 = vector.broadcast %cst_26 : f32 to vector<8x1xf32>
      %c0_27 = arith.constant 0 : index
      %c0_28 = arith.constant 0 : index
      %41 = vector.load %arg6[%c0_27, %c0_28] : memref<8x1xf32, #tpu.memory_space<vmem>>, vector<8x1xf32>
      tpu.vector_store %arg6[%c0_27, %c0_28], %40 {strides = array<i32>} : memref<8x1xf32, #tpu.memory_space<vmem>>, vector<8x1xf32>,
      %cst_29 = arith.constant 0.000000e+00 : f32
      %42 = vector.broadcast %cst_29 : f32 to vector<8x1xf32>
      %c0_30 = arith.constant 0 : index
      %c0_31 = arith.constant 0 : index
      %43 = vector.load %arg7[%c0_30, %c0_31] : memref<8x1xf32, #tpu.memory_space<vmem>>, vector<8x1xf32>
      tpu.vector_store %arg7[%c0_30, %c0_31], %42 {strides = array<i32>} : memref<8x1xf32, #tpu.memory_space<vmem>>, vector<8x1xf32>,
    } else {
    }
    %c0_9 = arith.constant 0 : index
    %c0_10 = arith.constant 0 : index
    %26 = vector.load %arg5[%c0_9, %c0_10] : memref<8x1xf32, #tpu.memory_space<vmem>>, vector<8x1xf32>
    %27 = arith.addf %26, %18 : vector<8x1xf32>
    %c0_11 = arith.constant 0 : index
    %c0_12 = arith.constant 0 : index
    %28 = vector.load %arg5[%c0_11, %c0_12] : memref<8x1xf32, #tpu.memory_space<vmem>>, vector<8x1xf32>
    tpu.vector_store %arg5[%c0_11, %c0_12], %27 {strides = array<i32>} : memref<8x1xf32, #tpu.memory_space<vmem>>, vector<8x1xf32>,
    %c0_13 = arith.constant 0 : index
    %c0_14 = arith.constant 0 : index
    %29 = vector.load %arg6[%c0_13, %c0_14] : memref<8x1xf32, #tpu.memory_space<vmem>>, vector<8x1xf32>
    %30 = arith.addf %29, %20 : vector<8x1xf32>
    %c0_15 = arith.constant 0 : index
    %c0_16 = arith.constant 0 : index
    %31 = vector.load %arg6[%c0_15, %c0_16] : memref<8x1xf32, #tpu.memory_space<vmem>>, vector<8x1xf32>
    tpu.vector_store %arg6[%c0_15, %c0_16], %30 {strides = array<i32>} : memref<8x1xf32, #tpu.memory_space<vmem>>, vector<8x1xf32>,
    %c0_17 = arith.constant 0 : index
    %c0_18 = arith.constant 0 : index
    %32 = vector.load %arg7[%c0_17, %c0_18] : memref<8x1xf32, #tpu.memory_space<vmem>>, vector<8x1xf32>
    %33 = arith.addf %32, %22 : vector<8x1xf32>
    %c0_19 = arith.constant 0 : index
    %c0_20 = arith.constant 0 : index
    %34 = vector.load %arg7[%c0_19, %c0_20] : memref<8x1xf32, #tpu.memory_space<vmem>>, vector<8x1xf32>
    tpu.vector_store %arg7[%c0_19, %c0_20], %33 {strides = array<i32>} : memref<8x1xf32, #tpu.memory_space<vmem>>, vector<8x1xf32>,
    %c0_i32_21 = arith.constant 0 : i32
    %35 = arith.cmpi eq, %arg1, %c0_i32_21 : i32
    %36 = arith.extui %35 : i1 to i32
    %c0_i32_22 = arith.constant 0 : i32
    %37 = arith.cmpi ne, %36, %c0_i32_22 : i32
    scf.if %37 {
      %c0_23 = arith.constant 0 : index
      %c0_24 = arith.constant 0 : index
      %38 = vector.load %arg5[%c0_23, %c0_24] : memref<8x1xf32, #tpu.memory_space<vmem>>, vector<8x1xf32>
      %cst_25 = arith.constant 2.000000e+00 : f32
      %39 = vector.broadcast %cst_25 : f32 to vector<8x1xf32>
      %40 = arith.mulf %39, %38 : vector<8x1xf32>
      %c0_26 = arith.constant 0 : index
      %c0_27 = arith.constant 0 : index
      %41 = vector.load %arg6[%c0_26, %c0_27] : memref<8x1xf32, #tpu.memory_space<vmem>>, vector<8x1xf32>
      %cst_28 = arith.constant 1.000000e+00 : f32
      %42 = vector.broadcast %cst_28 : f32 to vector<8x1xf32>
      %43 = arith.addf %41, %42 : vector<8x1xf32>
      %44 = arith.divf %40, %43 : vector<8x1xf32>
      %45 = vector.shape_cast %44 : vector<8x1xf32> to vector<1x8x1xf32>
      %cst_29 = arith.constant dense<0.000000e+00> : vector<1xf32>
      %46 = vector.multi_reduction <add>, %45, %cst_29 [1, 2] : vector<1x8x1xf32> to vector<1xf32>
      %47 = vector.shape_cast %46 : vector<1xf32> to vector<1x1x1xf32>
      %48 = vector.extract %47[0, 0, 0] : f32 from vector<1x1x1xf32>
      %c0_30 = arith.constant 0 : index
      %c0_31 = arith.constant 0 : index
      %49 = vector.load %arg7[%c0_30, %c0_31] : memref<8x1xf32, #tpu.memory_space<vmem>>, vector<8x1xf32>
      %50 = vector.shape_cast %49 : vector<8x1xf32> to vector<1x8x1xf32>
      %cst_32 = arith.constant dense<0.000000e+00> : vector<1xf32>
      %51 = vector.multi_reduction <add>, %50, %cst_32 [1, 2] : vector<1x8x1xf32> to vector<1xf32>
      %52 = vector.shape_cast %51 : vector<1xf32> to vector<1x1x1xf32>
      %53 = vector.extract %52[0, 0, 0] : f32 from vector<1x1x1xf32>
      %54 = tpu.iota {dimensions = array<i32: 1>} : vector<1x2x128xi32>
      %c0_i32_33 = arith.constant 0 : i32
      %55 = vector.broadcast %c0_i32_33 : i32 to vector<1x2x128xi32>
      %56 = arith.cmpi eq, %54, %55 : vector<1x2x128xi32>
      %57 = vector.broadcast %48 : f32 to vector<1x2x128xf32>
      %58 = vector.broadcast %53 : f32 to vector<1x2x128xf32>
      %59 = arith.select %56, %57, %58 : vector<1x2x128xi1>, vector<1x2x128xf32>
      %c0_34 = arith.constant 0 : index
      %c0_35 = arith.constant 0 : index
      %c0_36 = arith.constant 0 : index
      %60 = vector.load %arg4[%c0_34, %c0_35, %c0_36] : memref<1x2x128xf32, #tpu.memory_space<vmem>>, vector<1x2x128xf32>
      tpu.vector_store %arg4[%c0_34, %c0_35, %c0_36], %59 {strides = array<i32>} : memref<1x2x128xf32, #tpu.memory_space<vmem>>, vector<1x2x128xf32>,
    } else {
    }
    return
  }
  func.func @transform_0(%arg0: i32, %arg1: i32) -> (i32, i32) {
    %c0_i32 = arith.constant 0 : i32
    return %arg0, %arg1 : i32, i32
  }
  func.func @transform_1(%arg0: i32, %arg1: i32) -> (i32, i32) {
    %c0_i32 = arith.constant 0 : i32
    return %arg0, %arg1 : i32, i32
  }
  func.func @transform_2(%arg0: i32, %arg1: i32) -> (i32, i32, i32) {
    %c0_i32 = arith.constant 0 : i32
    %c0_i32_0 = arith.constant 0 : i32
    %c0_i32_1 = arith.constant 0 : i32
    return %arg0, %c0_i32, %c0_i32_0 : i32, i32, i32
  }
}

</mosaic_0001>

<llo_original>
// kernel: tpu_custom_call.1
$region0: #{tpu_custom_call.1}
  #allocation0 [shape = 'u32[]', space=smem, size = 0x4, offset = 0x4, fixed_abs, tag = 'smem constant byte address 0x4 - core index']
  #allocation1 [shape = 'u32[144,128]{1,0:T(1,128)}', space=vmem, size = 0x12000, scoped, tag = 'internal scratch']
  #allocation2 [shape = 'f32[8,1]{1,0:T(8,128)}', space=vmem, size = 0x1000, scoped, tag = 'scratch operand']
  #allocation3 [shape = 'f32[8,1]{1,0:T(8,128)}', space=vmem, size = 0x1000, scoped, tag = 'scratch operand']
  #allocation4 [shape = 'f32[8,1]{1,0:T(8,128)}', space=vmem, size = 0x1000, scoped, tag = 'scratch operand']
  %s0 = inlined_call_operand.hbm [shape: f32[8,256], index: 0, kind: input, shape index: {}]
  %s1 = inlined_call_operand.hbm [shape: f32[8,256], index: 1, kind: input, shape index: {}]
  %s2 = inlined_call_operand.hbm [shape: f32[1,2,128], index: 2, kind: output, shape index: {}]
  %s3 = sld [smem:[#allocation0]]
  $region34: #{tpu_custom_call.1} parent=0
    _
  %s5 = ssub.s32 1, %s3
  %s6 = scalar_select 0, %s5, %s3
  $region1: #{tpu_custom_call.1} parent=0
    #allocation5 [shape = 'u8[8192]{0}', space=vmem, size = 0x2000, scoped, tag = 'input window, operand 0, single buffered']
    #allocation6 [shape = 's32[1]{0}', space=sflag, size = 0x4, scoped, tag = 'scoped memory for tpu_custom_call.1']
    #allocation7 [shape = 's32[1]{0}', space=sflag, size = 0x4, scoped, tag = 'scoped memory for tpu_custom_call.1']
    #allocation8 [shape = 'u8[8192]{0}', space=vmem, size = 0x2000, scoped, tag = 'input window, operand 1, single buffered']
    #allocation9 [shape = 's32[1]{0}', space=sflag, size = 0x4, scoped, tag = 'scoped memory for tpu_custom_call.1']
    #allocation10 [shape = 'u8[1024]{0}', space=vmem, size = 0x400, scoped, tag = 'output window, operand 0, single buffered']
    %7 = vsyncpa [#allocation6], 0
    %8 = vsyncpa [#allocation9], 0
    %9 = vsyncpa [#allocation7], 0
    // Predicated region
    $region2: #{tpu_custom_call.1} parent=1 // pred_check
      _
    $region3: #{tpu_custom_call.1} parent=1 // pred_check_branch
      %11 = sbr.rel (0) target = $region5
    $region4: #{tpu_custom_call.1} parent=1 // pred_region
      %s13 = ssub.s32 256, 256
      %14 = vsyncadd [#allocation6], %s13
      %s16 = sshll.u32 [#allocation5], 4
      %s17 = int_to_ptr.vmem [resolvable:$true] %s16
      %19 = dma.hbm_to_vmem [thread:$0]  %s0, 256, %s17, [#allocation6]
    $region5: #{tpu_custom_call.1} parent=1 // pred_fallthru
      _
    // Predicated region
    $region6: #{tpu_custom_call.1} parent=1 // pred_check
      _
    $region7: #{tpu_custom_call.1} parent=1 // pred_check_branch
      %21 = sbr.rel (0) target = $region9
    $region8: #{tpu_custom_call.1} parent=1 // pred_region
      %s23 = ssub.s32 256, 256
      %24 = vsyncadd [#allocation9], %s23
      %s26 = sshll.u32 [#allocation8], 4
      %s27 = int_to_ptr.vmem [resolvable:$true] %s26
      %29 = dma.hbm_to_vmem [thread:$0]  %s1, 256, %s27, [#allocation9]
    $region9: #{tpu_custom_call.1} parent=1 // pred_fallthru
      _
    // Predicated region
    $region10: #{tpu_custom_call.1} parent=1 // pred_check
      _
    $region11: #{tpu_custom_call.1} parent=1 // pred_check_branch
      %31 = sbr.rel (0) target = $region13
    $region12: #{tpu_custom_call.1} parent=1 // pred_region
      %32 = dma.done [#allocation6], 256
    $region13: #{tpu_custom_call.1} parent=1 // pred_fallthru
      _
    // Predicated region
    $region14: #{tpu_custom_call.1} parent=1 // pred_check
      _
    $region15: #{tpu_custom_call.1} parent=1 // pred_check_branch
      %34 = sbr.rel (0) target = $region17
    $region16: #{tpu_custom_call.1} parent=1 // pred_region
      %35 = dma.done [#allocation9], 256
    $region17: #{tpu_custom_call.1} parent=1 // pred_fallthru
      _
    %v36 = vld [vmem:[#allocation5] sm:$0xff]
    %v37 = vld [vmem:[#allocation5 + $0x8] sm:$0xff]
    %v38 = vld [vmem:[#allocation8] sm:$0xff]
    %v39 = vld [vmem:[#allocation8 + $0x8] sm:$0xff]
    %v40 = vmul.f32 %v36, %v38
    %v41 = vmul.f32 %v37, %v39
    %v42 = vmul.f32 %v36, %v36
    %v43 = vmul.f32 %v37, %v37
    %v44 = vmul.f32 %v38, %v38
    %v45 = vmul.f32 %v39, %v39
    %v46 = vadd.f32 %v42, %v44
    %v47 = vadd.f32 %v43, %v45
    %v48 = vlog2.pop %v36
    %v49 = vmul.f32 %v48, 0.6931472
    %v50 = vlog2.pop %v37
    %v51 = vmul.f32 %v50, 0.6931472
    %v52 = vmax.f32 %v49, -100.0
    %v53 = vmax.f32 %v51, -100.0
    %v54 = vsub.f32 0.0, %v36
    %v55 = vsub.f32 0.0, %v37
    %v56 = vadd.f32 %v54, 1.0
    %v57 = vlog2.pop %v56
    %v58 = vmul.f32 %v57, 0.6931472
    %v59 = vmul.f32 -0.5, %v54
    %v60 = vadd.f32 %v59, 1.0
    %v61 = vmul.f32 %v60, %v54
    %v62 = vand.u32 2147483647, %v54
    %vm63 = vcmp.lt.f32.partialorder %v62, 0.0004427343
    %v64 = vsel %vm63, %v61, %v58
    %v65 = vadd.f32 %v55, 1.0
    %v66 = vlog2.pop %v65
    %v67 = vmul.f32 %v66, 0.6931472
    %v68 = vmul.f32 -0.5, %v55
    %v69 = vadd.f32 %v68, 1.0
    %v70 = vmul.f32 %v69, %v55
    %v71 = vand.u32 2147483647, %v55
    %vm72 = vcmp.lt.f32.partialorder %v71, 0.0004427343
    %v73 = vsel %vm72, %v70, %v67
    %v74 = vmax.f32 %v64, -100.0
    %v75 = vmax.f32 %v73, -100.0
    %v76 = vsub.f32 %v74, %v52
    %v77 = vsub.f32 %v75, %v53
    %v78 = vmul.f32 %v38, %v76
    %v79 = vmul.f32 %v39, %v77
    %v80 = vsub.f32 %v78, %v74
    %v81 = vsub.f32 %v79, %v75
    %v82 = vadd.f32 %v40, %v41
    %83 = vadd.xlane.f32.xlu0 %v82
    %v84 = vpop.xlane.xlu0 %83
    %v85 = vadd.f32 %v46, %v47
    %86 = vadd.xlane.f32.xlu0 %v85
    %v87 = vpop.xlane.xlu0 %86
    %v88 = vadd.f32 %v80, %v81
    %89 = vadd.xlane.f32.xlu0 %v88
    %v90 = vpop.xlane.xlu0 %89
    %p91 = scmp.eq.s32.totalorder 0, 0
    // Predicated region
    $region18: #{tpu_custom_call.1} parent=1 // pred_check
      %p92 = pneg %p91
    $region19: #{tpu_custom_call.1} parent=1 // pred_check_branch
      %94 = sbr.rel (%p92) target = $region21
    $region20: #{tpu_custom_call.1} parent=1 // pred_region
      %vm95 = vcmask 7168
      %96 = vst.msk [vmem:[#allocation2] sm:$0xff] %vm95, 0.0
      %97 = vst.msk [vmem:[#allocation3] sm:$0xff] %vm95, 0.0
      %98 = vst.msk [vmem:[#allocation4] sm:$0xff] %vm95, 0.0
    $region21: #{tpu_custom_call.1} parent=1 // pred_fallthru
      _
    %v99 = vld [vmem:[#allocation2] sm:$0xff]
    %v100 = vadd.f32 %v99, %v84
    %vm101 = vcmask 7168
    %102 = vst.msk [vmem:[#allocation2] sm:$0xff] %vm101, %v100
    %v103 = vld [vmem:[#allocation3] sm:$0xff]
    %v104 = vadd.f32 %v103, %v87
    %105 = vst.msk [vmem:[#allocation3] sm:$0xff] %vm101, %v104
    %v106 = vld [vmem:[#allocation4] sm:$0xff]
    %v107 = vadd.f32 %v106, %v90
    %108 = vst.msk [vmem:[#allocation4] sm:$0xff] %vm101, %v107
    // Predicated region
    $region22: #{tpu_custom_call.1} parent=1 // pred_check
      %p109 = pneg %p91
    $region23: #{tpu_custom_call.1} parent=1 // pred_check_branch
      %111 = sbr.rel (%p109) target = $region25
    $region24: #{tpu_custom_call.1} parent=1 // pred_region
      %v112 = vld [vmem:[#allocation2] sm:$0xff]
      %v113 = vmul.f32 %v112, 2.0
      %v114 = vld [vmem:[#allocation3] sm:$0xff]
      %v115 = vadd.f32 %v114, 1.0
      %v116 = vrcp.pop %v115
      %v117 = vmul.f32 %v113, %v116
      %v118 = vsel %vm101, %v117, 0.0
      %119 = vadd.xlane.f32.xlu0 %v118
      %v120 = vpop.xlane.xlu0 %119
      %v121 = vrot.slane %v120, 4
      %v122 = vadd.f32 %v120, %v121
      %v123 = vrot.slane %v122, 2
      %v124 = vadd.f32 %v122, %v123
      %v125 = vrot.slane %v124, 1
      %v126 = vadd.f32 %v124, %v125
      %s127 = vtos %v126
      %v128 = vld [vmem:[#allocation4] sm:$0xff]
      %v129 = vsel %vm101, %v128, 0.0
      %130 = vadd.xlane.f32.xlu0 %v129
      %v131 = vpop.xlane.xlu0 %130
      %v132 = vrot.slane %v131, 4
      %v133 = vadd.f32 %v131, %v132
      %v134 = vrot.slane %v133, 2
      %v135 = vadd.f32 %v133, %v134
      %v136 = vrot.slane %v135, 1
      %v137 = vadd.f32 %v135, %v136
      %s138 = vtos %v137
      %v139 = vlaneseq
      %v140 = vshrl.u32 %v139, 7
      %vm141 = vcmp.eq.s32.totalorder %v140, 0
      %v142 = vstv %s127
      %v143 = vstv %s138
      %v144 = vsel %vm141, %v142, %v143
      %145 = vst [vmem:[#allocation10] sm:$0x3] %v144
    $region25: #{tpu_custom_call.1} parent=1 // pred_fallthru
      _
    // Predicated region
    $region26: #{tpu_custom_call.1} parent=1 // pred_check
      _
    $region27: #{tpu_custom_call.1} parent=1 // pred_check_branch
      %147 = sbr.rel (0) target = $region29
    $region28: #{tpu_custom_call.1} parent=1 // pred_region
      %s149 = ssub.s32 32, 32
      %150 = vsyncadd [#allocation7], %s149
      %s152 = sshll.u32 [#allocation10], 4
      %s153 = int_to_ptr.vmem [resolvable:$true] %s152
      %155 = dma.vmem_to_hbm [thread:$0]  %s153, 32, %s2, [#allocation7]
    $region29: #{tpu_custom_call.1} parent=1 // pred_fallthru
      _
    // Predicated region
    $region30: #{tpu_custom_call.1} parent=1 // pred_check
      _
    $region31: #{tpu_custom_call.1} parent=1 // pred_check_branch
      %157 = sbr.rel (0) target = $region33
    $region32: #{tpu_custom_call.1} parent=1 // pred_region
      %158 = dma.done [#allocation7], 32
    $region33: #{tpu_custom_call.1} parent=1 // pred_fallthru
      _
    %159 = vsyncpa [#allocation6], 1
    %160 = vsyncpa [#allocation9], 1
    %161 = vsyncpa [#allocation7], 1

</llo_original>
